<compile_context>
chip_gen: v7x
topology: tpu7x:2x2x1
jax: 0.10.0
libtpu: 0.0.40
codegen_flags: <defaults>
</compile_context>

<pallas_src>
import functools

import jax
import jax.numpy as jnp
from jax import lax
from jax.experimental import pallas as pl
from jax.experimental.pallas import tpu as pltpu


_VMEM_LIMIT = 32 * 1024 * 1024  # safe on v5e/v6e (128 MiB phys) and v7x (64 MiB phys)


# ------------------------------------------------------------------
# helpers: tile selection + zero padding
# ------------------------------------------------------------------
def _round_up(x, m):
    return ((x + m - 1) // m) * m


def _pick_tile(dim, target, align):
    """Largest tile <= target that is a multiple of `align`, preferring one
    that divides the align-rounded dim exactly (no padding round trip)."""
    dim_a = _round_up(dim, align)
    if dim_a <= target:
        return dim_a
    t = (target // align) * align
    best = align
    while t >= align:
        if dim_a % t == 0:
            best = t
            break
        t -= align
    if best * 4 >= target:
        return best
    # Dividing tile would be tiny -> accept padding instead (bounded waste
    # vs. >=4x weight re-streaming from a small row tile).
    return (target // align) * align


def _pad2d(a, rows, cols):
    r, c = a.shape
    if rows == r and cols == c:
        return a
    return jnp.pad(a, ((0, rows - r), (0, cols - c)))


# ------------------------------------------------------------------
# Kernel 1: fused QKV projection (no bias, qkv_bias=False).
#   x (M, K) @ [Wq | Wk | Wv] -> q, k, v each (M, C);
#   softmax scale is folded into the q flush (free filler on the epilogue).
# ------------------------------------------------------------------
def _qkv_proj_kernel(x_ref, wq_ref, wk_ref, wv_ref,
                     q_ref, k_ref, v_ref,
                     qacc, kacc, vacc, *, scale):
    @pl.when(pl.program_id(2) == 0)
    def _():
        qacc[...] = jnp.zeros_like(qacc)
        kacc[...] = jnp.zeros_like(kacc)
        vacc[...] = jnp.zeros_like(vacc)

    x = x_ref[...]
    qacc[...] += jnp.dot(x, wq_ref[...], preferred_element_type=jnp.float32)
    kacc[...] += jnp.dot(x, wk_ref[...], preferred_element_type=jnp.float32)
    vacc[...] += jnp.dot(x, wv_ref[...], preferred_element_type=jnp.float32)

    @pl.when(pl.program_id(2) == pl.num_programs(2) - 1)
    def _():
        q_ref[...] = (qacc[...] * scale).astype(q_ref.dtype)
        k_ref[...] = kacc[...].astype(k_ref.dtype)
        v_ref[...] = vacc[...].astype(v_ref.dtype)


def qkv_projection(x2d, w_qkv, *, scale, tm=512, tn=256, tk=512):
    M, K = x2d.shape
    Kw, three_c = w_qkv.shape
    assert K == Kw and three_c % 3 == 0
    C = three_c // 3

    tm = _pick_tile(M, tm, 8)
    tk = _pick_tile(K, tk, 128)
    Mp, Kp = _round_up(M, tm), _round_up(K, tk)
    xp = _pad2d(x2d, Mp, Kp)

    # Prefer a column tile (multiple of 128) that divides C so the q/k/v
    # sections of w_qkv can be addressed by block offsets -> no slice copies.
    tn_shared = None
    for cand in (tn, 256, 128):
        cand = (cand // 128) * 128
        if cand >= 128 and C % cand == 0:
            tn_shared = cand
            break

    if tn_shared is not None:
        tn = tn_shared
        Np = C
        wp = _pad2d(w_qkv, Kp, three_c)   # pad contraction rows only

        def w_spec(section):
            off = section * (C // tn)
            return pl.BlockSpec((tk, tn),
                                lambda i, j, k, off=off: (k, j + off))

        w_inputs = (wp, wp, wp)
        w_specs = [w_spec(0), w_spec(1), w_spec(2)]
    else:
        # Small / unaligned C: fall back to weight slices (negligible here).
        tn = _pick_tile(C, tn, 128)
        Np = _round_up(C, tn)
        wq = _pad2d(w_qkv[:, :C], Kp, Np)
        wk = _pad2d(w_qkv[:, C:2 * C], Kp, Np)
        wv = _pad2d(w_qkv[:, 2 * C:], Kp, Np)
        w_inputs = (wq, wk, wv)
        spec = pl.BlockSpec((tk, tn), lambda i, j, k: (k, j))
        w_specs = [spec, spec, spec]

    x_spec = pl.BlockSpec((tm, tk), lambda i, j, k: (i, k))
    o_spec = pl.BlockSpec((tm, tn), lambda i, j, k: (i, j))
    out_sds = jax.ShapeDtypeStruct((Mp, Np), x2d.dtype)

    kern = functools.partial(_qkv_proj_kernel, scale=scale)
    q, k, v = pl.pallas_call(
        kern,
        out_shape=(out_sds, out_sds, out_sds),
        grid=(Mp // tm, Np // tn, Kp // tk),
        in_specs=[x_spec] + w_specs,
        out_specs=(o_spec, o_spec, o_spec),
        scratch_shapes=[
            pltpu.VMEM((tm, tn), jnp.float32),
            pltpu.VMEM((tm, tn), jnp.float32),
            pltpu.VMEM((tm, tn), jnp.float32),
        ],
        compiler_params=pltpu.CompilerParams(
            dimension_semantics=("parallel", "parallel", "arbitrary"),
            vmem_limit_bytes=_VMEM_LIMIT),
    )(xp, *w_inputs)

    if Mp != M or Np != C:
        q, k, v = q[:M, :C], k[:M, :C], v[:M, :C]
    return q, k, v


# ------------------------------------------------------------------
# Kernel 2: tiled linear projection with bias  (M, K) @ (K, Nout) + b
# ------------------------------------------------------------------
def _linear_kernel(x_ref, w_ref, b_ref, o_ref, acc_ref):
    @pl.when(pl.program_id(2) == 0)
    def _():
        acc_ref[...] = jnp.zeros_like(acc_ref)

    acc_ref[...] += jnp.dot(x_ref[...], w_ref[...],
                            preferred_element_type=jnp.float32)

    @pl.when(pl.program_id(2) == pl.num_programs(2) - 1)
    def _():
        o_ref[...] = (acc_ref[...] + b_ref[...]).astype(o_ref.dtype)


def linear(x2d, w, b, *, tm=512, tn=256, tk=512):
    M, K = x2d.shape
    Kw, Nout = w.shape
    assert K == Kw

    tm = _pick_tile(M, tm, 8)
    tk = _pick_tile(K, tk, 128)
    tn = _pick_tile(Nout, tn, 128)
    Mp, Kp, Np = _round_up(M, tm), _round_up(K, tk), _round_up(Nout, tn)

    xp = _pad2d(x2d, Mp, Kp)
    wp = _pad2d(w, Kp, Np)
    bp = _pad2d(b.reshape(1, -1), 1, Np)

    out = pl.pallas_call(
        _linear_kernel,
        out_shape=jax.ShapeDtypeStruct((Mp, Np), x2d.dtype),
        grid=(Mp // tm, Np // tn, Kp // tk),
        in_specs=[
            pl.BlockSpec((tm, tk), lambda i, j, k: (i, k)),
            pl.BlockSpec((tk, tn), lambda i, j, k: (k, j)),
            pl.BlockSpec((1, tn), lambda i, j, k: (0, j)),
        ],
        out_specs=pl.BlockSpec((tm, tn), lambda i, j, k: (i, j)),
        scratch_shapes=[pltpu.VMEM((tm, tn), jnp.float32)],
        compiler_params=pltpu.CompilerParams(
            dimension_semantics=("parallel", "parallel", "arbitrary"),
            vmem_limit_bytes=_VMEM_LIMIT),
    )(xp, wp, bp)

    if Mp != M or Np != Nout:
        out = out[:M, :Nout]
    return out


# ------------------------------------------------------------------
# Kernel 3: multi-head attention core.
#   Grid = (batch, head_group); each step handles a lane-aligned column
#   block (multiple of 128 wide, or full C for small models) of q/k/v and
#   writes the head-merged output block directly (no XLA transposes).
#   q arrives pre-scaled (scale folded into the QKV projection flush).
# ------------------------------------------------------------------
def _mhsa_kernel(q_ref, k_ref, v_ref, o_ref, o_acc, *, heads, head_dim):
    for h in range(heads):
        lo = h * head_dim
        hi = lo + head_dim
        qh = q_ref[:, lo:hi]                      # (N, hd), native dtype
        kh = k_ref[:, lo:hi]
        vh = v_ref[:, lo:hi]

        # QK^T without materializing kh.T: contract last dim of both operands.
        s = lax.dot_general(qh, kh,
                            dimension_numbers=(((1,), (1,)), ((), ())),
                            preferred_element_type=jnp.float32)     # (N, N)
        s = s - jnp.max(s, axis=-1, keepdims=True)
        p = jnp.exp(s)
        p = p / jnp.sum(p, axis=-1, keepdims=True)   # exact normalization
        oh = jnp.dot(p.astype(vh.dtype), vh,
                     preferred_element_type=jnp.float32)             # (N, hd)
        o_acc[:, lo:hi] = oh                      # bounded live state (1 head)

    # Single lane-dense store of the head-merged output block.
    o_ref[...] = o_acc[...].astype(o_ref.dtype)


def mhsa_core(q, k, v, *, num_heads):
    B, N, C = q.shape
    hd = C // num_heads

    # Smallest head group whose column width is a multiple of 128 (lane
    # aligned, good pipeline depth, work for both v7x TensorCores even at
    # B=1); fall back to all heads (block == full C) for small models.
    hb = num_heads
    for cand in range(1, num_heads + 1):
        if num_heads % cand == 0 and (cand * hd) % 128 == 0:
            hb = cand
            break
    cb = hb * hd

    spec = pl.BlockSpec((None, N, cb), lambda b, g: (b, 0, g))
    kern = functools.partial(_mhsa_kernel, heads=hb, head_dim=hd)
    return pl.pallas_call(
        kern,
        out_shape=jax.ShapeDtypeStruct((B, N, C), q.dtype),
        grid=(B, C // cb),
        in_specs=[spec, spec, spec],
        out_specs=spec,
        scratch_shapes=[pltpu.VMEM((N, cb), jnp.float32)],
        compiler_params=pltpu.CompilerParams(
            dimension_semantics=("parallel", "parallel"),
            vmem_limit_bytes=_VMEM_LIMIT),
    )(q, k, v)


# ------------------------------------------------------------------
# Full Attention module forward
# ------------------------------------------------------------------
def attention_forward(x, params, num_heads):
    B, N, C = x.shape
    hd = C // num_heads
    scale = hd ** (-0.5)

    x2d = x.reshape(B * N, C)

    # Fused QKV projection: q comes back pre-scaled, all in merged-head layout.
    q2d, k2d, v2d = qkv_projection(x2d, params["w_qkv"], scale=scale)
    q = q2d.reshape(B, N, C)
    k = k2d.reshape(B, N, C)
    v = v2d.reshape(B, N, C)

    # Attention; output already in head-merged (B, N, C) layout.
    o = mhsa_core(q, k, v, num_heads=num_heads)

    # Output projection.  attn_drop / proj_drop are identity (p = 0.0 / eval).
    out = linear(o.reshape(B * N, C), params["w_proj"], params["b_proj"])
    return out.reshape(B, N, C)


def init_params(key, dim):
    k1, k2, k3 = jax.random.split(key, 3)
    s = dim ** (-0.5)
    return {
        "w_qkv": jax.random.normal(k1, (dim, 3 * dim), jnp.float32) * s,
        # qkv_bias=False -> no qkv bias parameter at all.
        "w_proj": jax.random.normal(k2, (dim, dim), jnp.float32) * s,
        "b_proj": jax.random.normal(k3, (dim,), jnp.float32) * 0.5,
    }


def ref_forward(x, params, num_heads):
    """Pure-JAX reference mirroring the PyTorch forward, at highest precision."""
    B, N, C = x.shape
    hd = C // num_heads
    hp = lax.Precision.HIGHEST
    qkv = jnp.dot(x.reshape(B * N, C), params["w_qkv"], precision=hp)
    qkv = qkv.reshape(B, N, 3, num_heads, hd)
    qkv = jnp.transpose(qkv, (2, 0, 3, 1, 4))
    q, k, v = qkv[0], qkv[1], qkv[2]
    attn = jnp.einsum("bhnd,bhmd->bhnm", q, k, precision=hp) * (hd ** -0.5)
    attn = jax.nn.softmax(attn, axis=-1)
    o = jnp.einsum("bhnm,bhmd->bhnd", attn, v, precision=hp)
    o = jnp.transpose(o, (0, 2, 1, 3)).reshape(B * N, C)
    out = jnp.dot(o, params["w_proj"], precision=hp) + params["b_proj"]
    return out.reshape(B, N, C)


if __name__ == "__main__":
    B, N, C = 2, 8, 128
    num_heads = 8

    key = jax.random.PRNGKey(0)
    kx, kp = jax.random.split(key)
    x = jax.random.normal(kx, (B, N, C), jnp.float32)
    params = init_params(kp, C)

    out = attention_forward(x, params, num_heads)
    jax.block_until_ready(out)

    ref_out = ref_forward(x, params, num_heads)

    assert out.shape == ref_out.shape
    assert bool(jnp.all(jnp.isfinite(out)))
    # Tolerance sized for default-precision (bf16-pass) MXU matmuls in the
    # kernel compared against the Precision.HIGHEST reference; values are O(1).
    max_err = float(jnp.max(jnp.abs(out - ref_out)))
    assert jnp.allclose(out, ref_out, atol=3e-2, rtol=3e-2), (
        f"mismatch vs reference: max abs err = {max_err}")
    print("KERNEL_OK")
</pallas_src>

<mosaic_0001>
module attributes {stable_mosaic.version = 11 : i64} {
  func.func @_qkv_proj_kernel(%arg0: i32, %arg1: i32, %arg2: i32, %arg3: memref<16x128xf32, #tpu.memory_space<vmem>>, %arg4: memref<128x128xf32, #tpu.memory_space<vmem>>, %arg5: memref<128x128xf32, #tpu.memory_space<vmem>>, %arg6: memref<128x128xf32, #tpu.memory_space<vmem>>, %arg7: memref<16x128xf32, #tpu.memory_space<vmem>>, %arg8: memref<16x128xf32, #tpu.memory_space<vmem>>, %arg9: memref<16x128xf32, #tpu.memory_space<vmem>>, %arg10: memref<16x128xf32, #tpu.memory_space<vmem>>, %arg11: memref<16x128xf32, #tpu.memory_space<vmem>>, %arg12: memref<16x128xf32, #tpu.memory_space<vmem>>) attributes {dimension_semantics = [#tpu.dimension_semantics<parallel>, #tpu.dimension_semantics<parallel>, #tpu.dimension_semantics<arbitrary>], iteration_bounds = array<i64: 1, 1, 1>, scalar_prefetch = 0 : i64, scratch_operands = 3 : i64, tpu.core_type = #tpu.core_type<tc>, window_params = [{transform_indices = @transform_0, window_bounds = array<i64: 16, 128>}, {transform_indices = @transform_1, window_bounds = array<i64: 128, 128>}, {transform_indices = @transform_2, window_bounds = array<i64: 128, 128>}, {transform_indices = @transform_3, window_bounds = array<i64: 128, 128>}, {transform_indices = @transform_4, window_bounds = array<i64: 16, 128>}, {transform_indices = @transform_5, window_bounds = array<i64: 16, 128>}, {transform_indices = @transform_6, window_bounds = array<i64: 16, 128>}]} {
    %c0_i32 = arith.constant 0 : i32
    %0 = arith.cmpi eq, %arg2, %c0_i32 : i32
    %1 = arith.extui %0 : i1 to i32
    %c0_i32_0 = arith.constant 0 : i32
    %2 = arith.cmpi ne, %1, %c0_i32_0 : i32
    scf.if %2 {
      %cst_24 = arith.constant 0.000000e+00 : f32
      %22 = vector.broadcast %cst_24 : f32 to vector<16x128xf32>
      %c0_25 = arith.constant 0 : index
      %c0_26 = arith.constant 0 : index
      %23 = vector.load %arg10[%c0_25, %c0_26] : memref<16x128xf32, #tpu.memory_space<vmem>>, vector<16x128xf32>
      tpu.vector_store %arg10[%c0_25, %c0_26], %22 {strides = array<i32>} : memref<16x128xf32, #tpu.memory_space<vmem>>, vector<16x128xf32>,
      %cst_27 = arith.constant 0.000000e+00 : f32
      %24 = vector.broadcast %cst_27 : f32 to vector<16x128xf32>
      %c0_28 = arith.constant 0 : index
      %c0_29 = arith.constant 0 : index
      %25 = vector.load %arg11[%c0_28, %c0_29] : memref<16x128xf32, #tpu.memory_space<vmem>>, vector<16x128xf32>
      tpu.vector_store %arg11[%c0_28, %c0_29], %24 {strides = array<i32>} : memref<16x128xf32, #tpu.memory_space<vmem>>, vector<16x128xf32>,
      %cst_30 = arith.constant 0.000000e+00 : f32
      %26 = vector.broadcast %cst_30 : f32 to vector<16x128xf32>
      %c0_31 = arith.constant 0 : index
      %c0_32 = arith.constant 0 : index
      %27 = vector.load %arg12[%c0_31, %c0_32] : memref<16x128xf32, #tpu.memory_space<vmem>>, vector<16x128xf32>
      tpu.vector_store %arg12[%c0_31, %c0_32], %26 {strides = array<i32>} : memref<16x128xf32, #tpu.memory_space<vmem>>, vector<16x128xf32>,
    } else {
    }
    %c0 = arith.constant 0 : index
    %c0_1 = arith.constant 0 : index
    %3 = vector.load %arg3[%c0, %c0_1] : memref<16x128xf32, #tpu.memory_space<vmem>>, vector<16x128xf32>
    %c0_2 = arith.constant 0 : index
    %c0_3 = arith.constant 0 : index
    %4 = vector.load %arg10[%c0_2, %c0_3] : memref<16x128xf32, #tpu.memory_space<vmem>>, vector<16x128xf32>
    %c0_4 = arith.constant 0 : index
    %c0_5 = arith.constant 0 : index
    %5 = vector.load %arg4[%c0_4, %c0_5] : memref<128x128xf32, #tpu.memory_space<vmem>>, vector<128x128xf32>
    %cst = arith.constant dense<0.000000e+00> : vector<16x128xf32>
    %6 = tpu.matmul %3, %5, %cst {dimension_numbers = #tpu.dot_dimension_numbers<[1], [0], [0], [1], [0, 0, 1, 1], [], []>} : vector<16x128xf32>, vector<128x128xf32>, vector<16x128xf32> -> vector<16x128xf32>
    %7 = arith.addf %4, %6 : vector<16x128xf32>
    %c0_6 = arith.constant 0 : index
    %c0_7 = arith.constant 0 : index
    %8 = vector.load %arg10[%c0_6, %c0_7] : memref<16x128xf32, #tpu.memory_space<vmem>>, vector<16x128xf32>
    tpu.vector_store %arg10[%c0_6, %c0_7], %7 {strides = array<i32>} : memref<16x128xf32, #tpu.memory_space<vmem>>, vector<16x128xf32>,
    %c0_8 = arith.constant 0 : index
    %c0_9 = arith.constant 0 : index
    %9 = vector.load %arg11[%c0_8, %c0_9] : memref<16x128xf32, #tpu.memory_space<vmem>>, vector<16x128xf32>
    %c0_10 = arith.constant 0 : index
    %c0_11 = arith.constant 0 : index
    %10 = vector.load %arg5[%c0_10, %c0_11] : memref<128x128xf32, #tpu.memory_space<vmem>>, vector<128x128xf32>
    %cst_12 = arith.constant dense<0.000000e+00> : vector<16x128xf32>
    %11 = tpu.matmul %3, %10, %cst_12 {dimension_numbers = #tpu.dot_dimension_numbers<[1], [0], [0], [1], [0, 0, 1, 1], [], []>} : vector<16x128xf32>, vector<128x128xf32>, vector<16x128xf32> -> vector<16x128xf32>
    %12 = arith.addf %9, %11 : vector<16x128xf32>
    %c0_13 = arith.constant 0 : index
    %c0_14 = arith.constant 0 : index
    %13 = vector.load %arg11[%c0_13, %c0_14] : memref<16x128xf32, #tpu.memory_space<vmem>>, vector<16x128xf32>
    tpu.vector_store %arg11[%c0_13, %c0_14], %12 {strides = array<i32>} : memref<16x128xf32, #tpu.memory_space<vmem>>, vector<16x128xf32>,
    %c0_15 = arith.constant 0 : index
    %c0_16 = arith.constant 0 : index
    %14 = vector.load %arg12[%c0_15, %c0_16] : memref<16x128xf32, #tpu.memory_space<vmem>>, vector<16x128xf32>
    %c0_17 = arith.constant 0 : index
    %c0_18 = arith.constant 0 : index
    %15 = vector.load %arg6[%c0_17, %c0_18] : memref<128x128xf32, #tpu.memory_space<vmem>>, vector<128x128xf32>
    %cst_19 = arith.constant dense<0.000000e+00> : vector<16x128xf32>
    %16 = tpu.matmul %3, %15, %cst_19 {dimension_numbers = #tpu.dot_dimension_numbers<[1], [0], [0], [1], [0, 0, 1, 1], [], []>} : vector<16x128xf32>, vector<128x128xf32>, vector<16x128xf32> -> vector<16x128xf32>
    %17 = arith.addf %14, %16 : vector<16x128xf32>
    %c0_20 = arith.constant 0 : index
    %c0_21 = arith.constant 0 : index
    %18 = vector.load %arg12[%c0_20, %c0_21] : memref<16x128xf32, #tpu.memory_space<vmem>>, vector<16x128xf32>
    tpu.vector_store %arg12[%c0_20, %c0_21], %17 {strides = array<i32>} : memref<16x128xf32, #tpu.memory_space<vmem>>, vector<16x128xf32>,
    %c0_i32_22 = arith.constant 0 : i32
    %19 = arith.cmpi eq, %arg2, %c0_i32_22 : i32
    %20 = arith.extui %19 : i1 to i32
    %c0_i32_23 = arith.constant 0 : i32
    %21 = arith.cmpi ne, %20, %c0_i32_23 : i32
    scf.if %21 {
      %c0_24 = arith.constant 0 : index
      %c0_25 = arith.constant 0 : index
      %22 = vector.load %arg10[%c0_24, %c0_25] : memref<16x128xf32, #tpu.memory_space<vmem>>, vector<16x128xf32>
      %cst_26 = arith.constant 2.500000e-01 : f32
      %23 = vector.broadcast %cst_26 : f32 to vector<16x128xf32>
      %24 = arith.mulf %22, %23 : vector<16x128xf32>
      %c0_27 = arith.constant 0 : index
      %c0_28 = arith.constant 0 : index
      %25 = vector.load %arg7[%c0_27, %c0_28] : memref<16x128xf32, #tpu.memory_space<vmem>>, vector<16x128xf32>
      tpu.vector_store %arg7[%c0_27, %c0_28], %24 {strides = array<i32>} : memref<16x128xf32, #tpu.memory_space<vmem>>, vector<16x128xf32>,
      %c0_29 = arith.constant 0 : index
      %c0_30 = arith.constant 0 : index
      %26 = vector.load %arg11[%c0_29, %c0_30] : memref<16x128xf32, #tpu.memory_space<vmem>>, vector<16x128xf32>
      %c0_31 = arith.constant 0 : index
      %c0_32 = arith.constant 0 : index
      %27 = vector.load %arg8[%c0_31, %c0_32] : memref<16x128xf32, #tpu.memory_space<vmem>>, vector<16x128xf32>
      tpu.vector_store %arg8[%c0_31, %c0_32], %26 {strides = array<i32>} : memref<16x128xf32, #tpu.memory_space<vmem>>, vector<16x128xf32>,
      %c0_33 = arith.constant 0 : index
      %c0_34 = arith.constant 0 : index
      %28 = vector.load %arg12[%c0_33, %c0_34] : memref<16x128xf32, #tpu.memory_space<vmem>>, vector<16x128xf32>
      %c0_35 = arith.constant 0 : index
      %c0_36 = arith.constant 0 : index
      %29 = vector.load %arg9[%c0_35, %c0_36] : memref<16x128xf32, #tpu.memory_space<vmem>>, vector<16x128xf32>
      tpu.vector_store %arg9[%c0_35, %c0_36], %28 {strides = array<i32>} : memref<16x128xf32, #tpu.memory_space<vmem>>, vector<16x128xf32>,
    } else {
    }
    return
  }
  func.func @transform_0(%arg0: i32, %arg1: i32, %arg2: i32) -> (i32, i32) {
    %c0_i32 = arith.constant 0 : i32
    return %arg0, %arg2 : i32, i32
  }
  func.func @transform_1(%arg0: i32, %arg1: i32, %arg2: i32) -> (i32, i32) {
    %c0_i32 = arith.constant 0 : i32
    %0 = arith.addi %arg1, %c0_i32 : i32
    %c0_i32_0 = arith.constant 0 : i32
    return %arg2, %0 : i32, i32
  }
  func.func @transform_2(%arg0: i32, %arg1: i32, %arg2: i32) -> (i32, i32) {
    %c1_i32 = arith.constant 1 : i32
    %0 = arith.addi %arg1, %c1_i32 : i32
    %c0_i32 = arith.constant 0 : i32
    return %arg2, %0 : i32, i32
  }
  func.func @transform_3(%arg0: i32, %arg1: i32, %arg2: i32) -> (i32, i32) {
    %c2_i32 = arith.constant 2 : i32
    %0 = arith.addi %arg1, %c2_i32 : i32
    %c0_i32 = arith.constant 0 : i32
    return %arg2, %0 : i32, i32
  }
  func.func @transform_4(%arg0: i32, %arg1: i32, %arg2: i32) -> (i32, i32) {
    %c0_i32 = arith.constant 0 : i32
    return %arg0, %arg1 : i32, i32
  }
  func.func @transform_5(%arg0: i32, %arg1: i32, %arg2: i32) -> (i32, i32) {
    %c0_i32 = arith.constant 0 : i32
    return %arg0, %arg1 : i32, i32
  }
  func.func @transform_6(%arg0: i32, %arg1: i32, %arg2: i32) -> (i32, i32) {
    %c0_i32 = arith.constant 0 : i32
    return %arg0, %arg1 : i32, i32
  }
}

</mosaic_0001>

<llo_original>
// kernel: tpu_custom_call.1
$region0: #{tpu_custom_call.1}
  #allocation0 [shape = 'u32[]', space=smem, size = 0x4, offset = 0x4, fixed_abs, tag = 'smem constant byte address 0x4 - core index']
  #allocation1 [shape = 'u32[144,128]{1,0:T(1,128)}', space=vmem, size = 0x12000, scoped, tag = 'internal scratch']
  #allocation2 [shape = 'f32[16,128]{1,0:T(8,128)}', space=vmem, size = 0x2000, scoped, tag = 'scratch operand']
  #allocation3 [shape = 'f32[16,128]{1,0:T(8,128)}', space=vmem, size = 0x2000, scoped, tag = 'scratch operand']
  #allocation4 [shape = 'f32[16,128]{1,0:T(8,128)}', space=vmem, size = 0x2000, scoped, tag = 'scratch operand']
  %s0 = inlined_call_operand.hbm [shape: f32[16,128], index: 0, kind: input, shape index: {}]
  %s1 = inlined_call_operand.hbm [shape: f32[128,384], index: 1, kind: input, shape index: {}]
  %s2 = inlined_call_operand.hbm [shape: f32[128,384], index: 2, kind: input, shape index: {}]
  %s3 = inlined_call_operand.hbm [shape: f32[128,384], index: 3, kind: input, shape index: {}]
  %s4 = inlined_call_operand.hbm [shape: f32[16,128], index: 4, kind: output, shape index: {0}]
  %s5 = inlined_call_operand.hbm [shape: f32[16,128], index: 5, kind: output, shape index: {1}]
  %s6 = inlined_call_operand.hbm [shape: f32[16,128], index: 6, kind: output, shape index: {2}]
  %7 = xla_tuple %s4, %s5, %s6
  %s8 = sld [smem:[#allocation0]]
  $region66: #{tpu_custom_call.1} parent=0
    _
  %s10 = ssub.s32 1, %s8
  %s11 = scalar_select 0, %s10, %s8
  $region1: #{tpu_custom_call.1} parent=0
    #allocation5 [shape = 'u8[8192]{0}', space=vmem, size = 0x2000, scoped, tag = 'input window, operand 0, single buffered']
    #allocation6 [shape = 's32[1]{0}', space=sflag, size = 0x4, scoped, tag = 'scoped memory for tpu_custom_call.1']
    #allocation7 [shape = 's32[1]{0}', space=sflag, size = 0x4, scoped, tag = 'scoped memory for tpu_custom_call.1']
    #allocation8 [shape = 'u8[65536]{0}', space=vmem, size = 0x10000, scoped, tag = 'input window, operand 1, single buffered']
    #allocation9 [shape = 's32[1]{0}', space=sflag, size = 0x4, scoped, tag = 'scoped memory for tpu_custom_call.1']
    #allocation10 [shape = 'u8[65536]{0}', space=vmem, size = 0x10000, scoped, tag = 'input window, operand 2, single buffered']
    #allocation11 [shape = 'u8[65536]{0}', space=vmem, size = 0x10000, scoped, tag = 'input window, operand 3, single buffered']
    #allocation12 [shape = 's32[1]{0}', space=sflag, size = 0x4, scoped, tag = 'scoped memory for tpu_custom_call.1']
    #allocation13 [shape = 'u8[8192]{0}', space=vmem, size = 0x2000, scoped, tag = 'output window, operand 0, single buffered']
    #allocation14 [shape = 'u8[8192]{0}', space=vmem, size = 0x2000, scoped, tag = 'output window, operand 1, single buffered']
    #allocation15 [shape = 's32[1]{0}', space=sflag, size = 0x4, scoped, tag = 'scoped memory for tpu_custom_call.1']
    #allocation16 [shape = 'u8[8192]{0}', space=vmem, size = 0x2000, scoped, tag = 'output window, operand 2, single buffered']
    %12 = vsyncpa [#allocation6], 0
    %13 = vsyncpa [#allocation9], 0
    %14 = vsyncpa [#allocation12], 0
    %15 = vsyncpa [#allocation7], 0
    %16 = vsyncpa [#allocation15], 0
    // Predicated region
    $region2: #{tpu_custom_call.1} parent=1 // pred_check
      _
    $region3: #{tpu_custom_call.1} parent=1 // pred_check_branch
      %18 = sbr.rel (0) target = $region5
    $region4: #{tpu_custom_call.1} parent=1 // pred_region
      %s20 = ssub.s32 256, 256
      %21 = vsyncadd [#allocation6], %s20
      %s22 = sshll.u32 [#allocation5], 4
      %s23 = int_to_ptr.vmem [resolvable:$true] %s22
      %28 = dma.hbm_to_vmem [thread:$0]  %s0, 256, %s23, [#allocation6], 128, 128, 8
    $region5: #{tpu_custom_call.1} parent=1 // pred_fallthru
      _
    // Predicated region
    $region6: #{tpu_custom_call.1} parent=1 // pred_check
      _
    $region7: #{tpu_custom_call.1} parent=1 // pred_check_branch
      %30 = sbr.rel (0) target = $region9
    $region8: #{tpu_custom_call.1} parent=1 // pred_region
      %s32 = ssub.s32 2048, 2048
      %33 = vsyncadd [#allocation9], %s32
      %s34 = sshll.u32 [#allocation8], 4
      %s35 = int_to_ptr.vmem [resolvable:$true] %s34
      %40 = dma.hbm_to_vmem [thread:$0]  %s1, 2048, %s35, [#allocation9], 384, 128, 8
    $region9: #{tpu_custom_call.1} parent=1 // pred_fallthru
      _
    // Predicated region
    $region10: #{tpu_custom_call.1} parent=1 // pred_check
      _
    $region11: #{tpu_custom_call.1} parent=1 // pred_check_branch
      %42 = sbr.rel (0) target = $region13
    $region12: #{tpu_custom_call.1} parent=1 // pred_region
      %s43 = sadd.s32 0, 1
      %s45 = ssub.s32 2048, 2048
      %46 = vsyncadd [#allocation9], %s45
      %s47 = smul.addr %s43, 128
      %s48 = scalar_lea.hbm %s2, %s47
      %s49 = sshll.u32 [#allocation10], 4
      %s50 = int_to_ptr.vmem [resolvable:$true] %s49
      %55 = dma.hbm_to_vmem [thread:$0]  %s48, 2048, %s50, [#allocation9], 384, 128, 8
    $region13: #{tpu_custom_call.1} parent=1 // pred_fallthru
      _
    // Predicated region
    $region14: #{tpu_custom_call.1} parent=1 // pred_check
      _
    $region15: #{tpu_custom_call.1} parent=1 // pred_check_branch
      %57 = sbr.rel (0) target = $region17
    $region16: #{tpu_custom_call.1} parent=1 // pred_region
      %s58 = sadd.s32 0, 2
      %s60 = ssub.s32 2048, 2048
      %61 = vsyncadd [#allocation12], %s60
      %s62 = smul.addr %s58, 128
      %s63 = scalar_lea.hbm %s3, %s62
      %s64 = sshll.u32 [#allocation11], 4
      %s65 = int_to_ptr.vmem [resolvable:$true] %s64
      %70 = dma.hbm_to_vmem [thread:$0]  %s63, 2048, %s65, [#allocation12], 384, 128, 8
    $region17: #{tpu_custom_call.1} parent=1 // pred_fallthru
      _
    // Predicated region
    $region18: #{tpu_custom_call.1} parent=1 // pred_check
      _
    $region19: #{tpu_custom_call.1} parent=1 // pred_check_branch
      %72 = sbr.rel (0) target = $region21
    $region20: #{tpu_custom_call.1} parent=1 // pred_region
      %73 = dma.done [#allocation6], 256
    $region21: #{tpu_custom_call.1} parent=1 // pred_fallthru
      _
    // Predicated region
    $region22: #{tpu_custom_call.1} parent=1 // pred_check
      _
    $region23: #{tpu_custom_call.1} parent=1 // pred_check_branch
      %75 = sbr.rel (0) target = $region25
    $region24: #{tpu_custom_call.1} parent=1 // pred_region
      %76 = dma.done [#allocation9], 2048
    $region25: #{tpu_custom_call.1} parent=1 // pred_fallthru
      _
    // Predicated region
    $region26: #{tpu_custom_call.1} parent=1 // pred_check
      _
    $region27: #{tpu_custom_call.1} parent=1 // pred_check_branch
      %78 = sbr.rel (0) target = $region29
    $region28: #{tpu_custom_call.1} parent=1 // pred_region
      %79 = dma.done [#allocation9], 2048
    $region29: #{tpu_custom_call.1} parent=1 // pred_fallthru
      _
    // Predicated region
    $region30: #{tpu_custom_call.1} parent=1 // pred_check
      _
    $region31: #{tpu_custom_call.1} parent=1 // pred_check_branch
      %81 = sbr.rel (0) target = $region33
    $region32: #{tpu_custom_call.1} parent=1 // pred_region
      %82 = dma.done [#allocation12], 2048
    $region33: #{tpu_custom_call.1} parent=1 // pred_fallthru
      _
    %s83 = sadd.s32 0, 1
    %s84 = sadd.s32 0, 2
    %p85 = scmp.eq.s32.totalorder 0, 0
    // Predicated region
    $region34: #{tpu_custom_call.1} parent=1 // pred_check
      %p86 = pneg %p85
    $region35: #{tpu_custom_call.1} parent=1 // pred_check_branch
      %88 = sbr.rel (%p86) target = $region37
    $region36: #{tpu_custom_call.1} parent=1 // pred_region
      %89 = vst [vmem:[#allocation2] sm:$0xff] 0.0
      %90 = vst [vmem:[#allocation2 + $0x8] sm:$0xff] 0.0
      %91 = vst [vmem:[#allocation3] sm:$0xff] 0.0
      %92 = vst [vmem:[#allocation3 + $0x8] sm:$0xff] 0.0
      %93 = vst [vmem:[#allocation4] sm:$0xff] 0.0
      %94 = vst [vmem:[#allocation4 + $0x8] sm:$0xff] 0.0
    $region37: #{tpu_custom_call.1} parent=1 // pred_fallthru
      _
    %v95 = vld [vmem:[#allocation5] sm:$0xff]
    %v96 = vld [vmem:[#allocation5 + $0x8] sm:$0xff]
    %v97 = vld [vmem:[#allocation2] sm:$0xff]
    %v98 = vld [vmem:[#allocation2 + $0x8] sm:$0xff]
    %v99 = vld [vmem:[#allocation8] sm:$0xff]
    %v100 = vld [vmem:[#allocation8 + $0x8] sm:$0xff]
    %v101 = vld [vmem:[#allocation8 + $0x10] sm:$0xff]
    %v102 = vld [vmem:[#allocation8 + $0x18] sm:$0xff]
    %v103 = vld [vmem:[#allocation8 + $0x20] sm:$0xff]
    %v104 = vld [vmem:[#allocation8 + $0x28] sm:$0xff]
    %v105 = vld [vmem:[#allocation8 + $0x30] sm:$0xff]
    %v106 = vld [vmem:[#allocation8 + $0x38] sm:$0xff]
    %v107 = vld [vmem:[#allocation8 + $0x40] sm:$0xff]
    %v108 = vld [vmem:[#allocation8 + $0x48] sm:$0xff]
    %v109 = vld [vmem:[#allocation8 + $0x50] sm:$0xff]
    %v110 = vld [vmem:[#allocation8 + $0x58] sm:$0xff]
    %v111 = vld [vmem:[#allocation8 + $0x60] sm:$0xff]
    %v112 = vld [vmem:[#allocation8 + $0x68] sm:$0xff]
    %v113 = vld [vmem:[#allocation8 + $0x70] sm:$0xff]
    %v114 = vld [vmem:[#allocation8 + $0x78] sm:$0xff]
    %115 = vmatprep.subr.mxu0 0.0
    %116 = vmatpush1.msra.mxu0 %v99
    %117 = vmatprep.subr.mxu0 0.0
    %118 = vmatpush1.msra.mxu0 %v100
    %119 = vmatprep.subr.mxu0 0.0
    %120 = vmatpush1.msra.mxu0 %v101
    %121 = vmatprep.subr.mxu0 0.0
    %122 = vmatpush1.msra.mxu0 %v102
    %123 = vmatprep.subr.mxu0 0.0
    %124 = vmatpush1.msra.mxu0 %v103
    %125 = vmatprep.subr.mxu0 0.0
    %126 = vmatpush1.msra.mxu0 %v104
    %127 = vmatprep.subr.mxu0 0.0
    %128 = vmatpush1.msra.mxu0 %v105
    %129 = vmatprep.subr.mxu0 0.0
    %130 = vmatpush1.msra.mxu0 %v106
    %131 = vmatprep.subr.mxu0 0.0
    %132 = vmatpush1.msra.mxu0 %v107
    %133 = vmatprep.subr.mxu0 0.0
    %134 = vmatpush1.msra.mxu0 %v108
    %135 = vmatprep.subr.mxu0 0.0
    %136 = vmatpush1.msra.mxu0 %v109
    %137 = vmatprep.subr.mxu0 0.0
    %138 = vmatpush1.msra.mxu0 %v110
    %139 = vmatprep.subr.mxu0 0.0
    %140 = vmatpush1.msra.mxu0 %v111
    %141 = vmatprep.subr.mxu0 0.0
    %142 = vmatpush1.msra.mxu0 %v112
    %143 = vmatprep.subr.mxu0 0.0
    %144 = vmatpush1.msra.mxu0 %v113
    %145 = vmatprep.subr.mxu0 0.0
    %146 = vmatpush1.msra.mxu0 %v114
    %147 = vmatprep.subr.mxu0 0.0
    %148 = vmatpush1.msra.mxu0 0.0
    %149 = vmatprep.subr.mxu0 0.0
    %150 = vmatpush1.msra.mxu0 0.0
    %151 = vmatprep.subr.mxu0 0.0
    %152 = vmatpush1.msra.mxu0 0.0
    %153 = vmatprep.subr.mxu0 0.0
    %154 = vmatpush1.msra.mxu0 0.0
    %155 = vmatprep.subr.mxu0 0.0
    %156 = vmatpush1.msra.mxu0 0.0
    %157 = vmatprep.subr.mxu0 0.0
    %158 = vmatpush1.msra.mxu0 0.0
    %159 = vmatprep.subr.mxu0 0.0
    %160 = vmatpush1.msra.mxu0 0.0
    %161 = vmatprep.subr.mxu0 0.0
    %162 = vmatpush1.msra.mxu0 0.0
    %163 = vmatprep.subr.mxu0 0.0
    %164 = vmatpush1.msra.mxu0 0.0
    %165 = vmatprep.subr.mxu0 0.0
    %166 = vmatpush1.msra.mxu0 0.0
    %167 = vmatprep.subr.mxu0 0.0
    %168 = vmatpush1.msra.mxu0 0.0
    %169 = vmatprep.subr.mxu0 0.0
    %170 = vmatpush1.msra.mxu0 0.0
    %171 = vmatprep.subr.mxu0 0.0
    %172 = vmatpush1.msra.mxu0 0.0
    %173 = vmatprep.subr.mxu0 0.0
    %174 = vmatpush1.msra.mxu0 0.0
    %175 = vmatprep.subr.mxu0 0.0
    %176 = vmatpush1.msra.mxu0 0.0
    %177 = vmatprep.subr.mxu0 0.0
    %178 = vmatpush1.msra.mxu0 0.0
    %179 = vmatprep.mubr.f32.mxu0 0.0
    %180 = vmatmul.mubr.f32.gmra.mrb[0].mxu0 %v95
    %v181 = vpop.f32.mrb[0].mxu0
    %v182 = vadd.f32 0.0, %v181
    %v183 = vpop.f32.mrb[0].mxu0
    %184 = vmatprep.mubr.f32.mxu0 0.0
    %185 = vmatmul.mubr.f32.gmra.mrb[0].mxu0 %v96
    %v186 = vpop.f32.mrb[0].mxu0
    %v187 = vadd.f32 0.0, %v186
    %v188 = vpop.f32.mrb[0].mxu0
    %189 = vdwg.mxu0
    %v190 = vadd.f32 %v97, %v182
    %v191 = vadd.f32 %v98, %v187
    %192 = vst [vmem:[#allocation2] sm:$0xff] %v190
    %193 = vst [vmem:[#allocation2 + $0x8] sm:$0xff] %v191
    %v194 = vld [vmem:[#allocation3] sm:$0xff]
    %v195 = vld [vmem:[#allocation3 + $0x8] sm:$0xff]
    %v196 = vld [vmem:[#allocation10] sm:$0xff]
    %v197 = vld [vmem:[#allocation10 + $0x8] sm:$0xff]
    %v198 = vld [vmem:[#allocation10 + $0x10] sm:$0xff]
    %v199 = vld [vmem:[#allocation10 + $0x18] sm:$0xff]
    %v200 = vld [vmem:[#allocation10 + $0x20] sm:$0xff]
    %v201 = vld [vmem:[#allocation10 + $0x28] sm:$0xff]
    %v202 = vld [vmem:[#allocation10 + $0x30] sm:$0xff]
    %v203 = vld [vmem:[#allocation10 + $0x38] sm:$0xff]
    %v204 = vld [vmem:[#allocation10 + $0x40] sm:$0xff]
    %v205 = vld [vmem:[#allocation10 + $0x48] sm:$0xff]
    %v206 = vld [vmem:[#allocation10 + $0x50] sm:$0xff]
    %v207 = vld [vmem:[#allocation10 + $0x58] sm:$0xff]
    %v208 = vld [vmem:[#allocation10 + $0x60] sm:$0xff]
    %v209 = vld [vmem:[#allocation10 + $0x68] sm:$0xff]
    %v210 = vld [vmem:[#allocation10 + $0x70] sm:$0xff]
    %v211 = vld [vmem:[#allocation10 + $0x78] sm:$0xff]
    %212 = vmatprep.subr.mxu0 0.0
    %213 = vmatpush1.msra.mxu0 %v196
    %214 = vmatprep.subr.mxu0 0.0
    %215 = vmatpush1.msra.mxu0 %v197
    %216 = vmatprep.subr.mxu0 0.0
    %217 = vmatpush1.msra.mxu0 %v198
    %218 = vmatprep.subr.mxu0 0.0
    %219 = vmatpush1.msra.mxu0 %v199
    %220 = vmatprep.subr.mxu0 0.0
    %221 = vmatpush1.msra.mxu0 %v200
    %222 = vmatprep.subr.mxu0 0.0
    %223 = vmatpush1.msra.mxu0 %v201
    %224 = vmatprep.subr.mxu0 0.0
    %225 = vmatpush1.msra.mxu0 %v202
    %226 = vmatprep.subr.mxu0 0.0
    %227 = vmatpush1.msra.mxu0 %v203
    %228 = vmatprep.subr.mxu0 0.0
    %229 = vmatpush1.msra.mxu0 %v204
    %230 = vmatprep.subr.mxu0 0.0
    %231 = vmatpush1.msra.mxu0 %v205
    %232 = vmatprep.subr.mxu0 0.0
    %233 = vmatpush1.msra.mxu0 %v206
    %234 = vmatprep.subr.mxu0 0.0
    %235 = vmatpush1.msra.mxu0 %v207
    %236 = vmatprep.subr.mxu0 0.0
    %237 = vmatpush1.msra.mxu0 %v208
    %238 = vmatprep.subr.mxu0 0.0
    %239 = vmatpush1.msra.mxu0 %v209
    %240 = vmatprep.subr.mxu0 0.0
    %241 = vmatpush1.msra.mxu0 %v210
    %242 = vmatprep.subr.mxu0 0.0
    %243 = vmatpush1.msra.mxu0 %v211
    %244 = vmatprep.subr.mxu0 0.0
    %245 = vmatpush1.msra.mxu0 0.0
    %246 = vmatprep.subr.mxu0 0.0
    %247 = vmatpush1.msra.mxu0 0.0
    %248 = vmatprep.subr.mxu0 0.0
    %249 = vmatpush1.msra.mxu0 0.0
    %250 = vmatprep.subr.mxu0 0.0
    %251 = vmatpush1.msra.mxu0 0.0
    %252 = vmatprep.subr.mxu0 0.0
    %253 = vmatpush1.msra.mxu0 0.0
    %254 = vmatprep.subr.mxu0 0.0
    %255 = vmatpush1.msra.mxu0 0.0
    %256 = vmatprep.subr.mxu0 0.0
    %257 = vmatpush1.msra.mxu0 0.0
    %258 = vmatprep.subr.mxu0 0.0
    %259 = vmatpush1.msra.mxu0 0.0
    %260 = vmatprep.subr.mxu0 0.0
    %261 = vmatpush1.msra.mxu0 0.0
    %262 = vmatprep.subr.mxu0 0.0
    %263 = vmatpush1.msra.mxu0 0.0
    %264 = vmatprep.subr.mxu0 0.0
    %265 = vmatpush1.msra.mxu0 0.0
    %266 = vmatprep.subr.mxu0 0.0
    %267 = vmatpush1.msra.mxu0 0.0
    %268 = vmatprep.subr.mxu0 0.0
    %269 = vmatpush1.msra.mxu0 0.0
    %270 = vmatprep.subr.mxu0 0.0
    %271 = vmatpush1.msra.mxu0 0.0
    %272 = vmatprep.subr.mxu0 0.0
    %273 = vmatpush1.msra.mxu0 0.0
    %274 = vmatprep.subr.mxu0 0.0
    %275 = vmatpush1.msra.mxu0 0.0
    %276 = vmatprep.mubr.f32.mxu0 0.0
    %277 = vmatmul.mubr.f32.gmra.mrb[0].mxu0 %v95
    %v278 = vpop.f32.mrb[0].mxu0
    %v279 = vadd.f32 0.0, %v278
    %v280 = vpop.f32.mrb[0].mxu0
    %281 = vmatprep.mubr.f32.mxu0 0.0
    %282 = vmatmul.mubr.f32.gmra.mrb[0].mxu0 %v96
    %v283 = vpop.f32.mrb[0].mxu0
    %v284 = vadd.f32 0.0, %v283
    %v285 = vpop.f32.mrb[0].mxu0
    %286 = vdwg.mxu0
    %v287 = vadd.f32 %v194, %v279
    %v288 = vadd.f32 %v195, %v284
    %289 = vst [vmem:[#allocation3] sm:$0xff] %v287
    %290 = vst [vmem:[#allocation3 + $0x8] sm:$0xff] %v288
    %v291 = vld [vmem:[#allocation4] sm:$0xff]
    %v292 = vld [vmem:[#allocation4 + $0x8] sm:$0xff]
    %v293 = vld [vmem:[#allocation11] sm:$0xff]
    %v294 = vld [vmem:[#allocation11 + $0x8] sm:$0xff]
    %v295 = vld [vmem:[#allocation11 + $0x10] sm:$0xff]
    %v296 = vld [vmem:[#allocation11 + $0x18] sm:$0xff]
    %v297 = vld [vmem:[#allocation11 + $0x20] sm:$0xff]
    %v298 = vld [vmem:[#allocation11 + $0x28] sm:$0xff]
    %v299 = vld [vmem:[#allocation11 + $0x30] sm:$0xff]
    %v300 = vld [vmem:[#allocation11 + $0x38] sm:$0xff]
    %v301 = vld [vmem:[#allocation11 + $0x40] sm:$0xff]
    %v302 = vld [vmem:[#allocation11 + $0x48] sm:$0xff]
    %v303 = vld [vmem:[#allocation11 + $0x50] sm:$0xff]
    %v304 = vld [vmem:[#allocation11 + $0x58] sm:$0xff]
    %v305 = vld [vmem:[#allocation11 + $0x60] sm:$0xff]
    %v306 = vld [vmem:[#allocation11 + $0x68] sm:$0xff]
    %v307 = vld [vmem:[#allocation11 + $0x70] sm:$0xff]
    %v308 = vld [vmem:[#allocation11 + $0x78] sm:$0xff]
    %309 = vmatprep.subr.mxu0 0.0
    %310 = vmatpush1.msra.mxu0 %v293
    %311 = vmatprep.subr.mxu0 0.0
    %312 = vmatpush1.msra.mxu0 %v294
    %313 = vmatprep.subr.mxu0 0.0
    %314 = vmatpush1.msra.mxu0 %v295
    %315 = vmatprep.subr.mxu0 0.0
    %316 = vmatpush1.msra.mxu0 %v296
    %317 = vmatprep.subr.mxu0 0.0
    %318 = vmatpush1.msra.mxu0 %v297
    %319 = vmatprep.subr.mxu0 0.0
    %320 = vmatpush1.msra.mxu0 %v298
    %321 = vmatprep.subr.mxu0 0.0
    %322 = vmatpush1.msra.mxu0 %v299
    %323 = vmatprep.subr.mxu0 0.0
    %324 = vmatpush1.msra.mxu0 %v300
    %325 = vmatprep.subr.mxu0 0.0
    %326 = vmatpush1.msra.mxu0 %v301
    %327 = vmatprep.subr.mxu0 0.0
    %328 = vmatpush1.msra.mxu0 %v302
    %329 = vmatprep.subr.mxu0 0.0
    %330 = vmatpush1.msra.mxu0 %v303
    %331 = vmatprep.subr.mxu0 0.0
    %332 = vmatpush1.msra.mxu0 %v304
    %333 = vmatprep.subr.mxu0 0.0
    %334 = vmatpush1.msra.mxu0 %v305
    %335 = vmatprep.subr.mxu0 0.0
    %336 = vmatpush1.msra.mxu0 %v306
    %337 = vmatprep.subr.mxu0 0.0
    %338 = vmatpush1.msra.mxu0 %v307
    %339 = vmatprep.subr.mxu0 0.0
    %340 = vmatpush1.msra.mxu0 %v308
    %341 = vmatprep.subr.mxu0 0.0
    %342 = vmatpush1.msra.mxu0 0.0
    %343 = vmatprep.subr.mxu0 0.0
    %344 = vmatpush1.msra.mxu0 0.0
    %345 = vmatprep.subr.mxu0 0.0
    %346 = vmatpush1.msra.mxu0 0.0
    %347 = vmatprep.subr.mxu0 0.0
    %348 = vmatpush1.msra.mxu0 0.0
    %349 = vmatprep.subr.mxu0 0.0
    %350 = vmatpush1.msra.mxu0 0.0
    %351 = vmatprep.subr.mxu0 0.0
    %352 = vmatpush1.msra.mxu0 0.0
    %353 = vmatprep.subr.mxu0 0.0
    %354 = vmatpush1.msra.mxu0 0.0
    %355 = vmatprep.subr.mxu0 0.0
    %356 = vmatpush1.msra.mxu0 0.0
    %357 = vmatprep.subr.mxu0 0.0
    %358 = vmatpush1.msra.mxu0 0.0
    %359 = vmatprep.subr.mxu0 0.0
    %360 = vmatpush1.msra.mxu0 0.0
    %361 = vmatprep.subr.mxu0 0.0
    %362 = vmatpush1.msra.mxu0 0.0
    %363 = vmatprep.subr.mxu0 0.0
    %364 = vmatpush1.msra.mxu0 0.0
    %365 = vmatprep.subr.mxu0 0.0
    %366 = vmatpush1.msra.mxu0 0.0
    %367 = vmatprep.subr.mxu0 0.0
    %368 = vmatpush1.msra.mxu0 0.0
    %369 = vmatprep.subr.mxu0 0.0
    %370 = vmatpush1.msra.mxu0 0.0
    %371 = vmatprep.subr.mxu0 0.0
    %372 = vmatpush1.msra.mxu0 0.0
    %373 = vmatprep.mubr.f32.mxu0 0.0
    %374 = vmatmul.mubr.f32.gmra.mrb[0].mxu0 %v95
    %v375 = vpop.f32.mrb[0].mxu0
    %v376 = vadd.f32 0.0, %v375
    %v377 = vpop.f32.mrb[0].mxu0
    %378 = vmatprep.mubr.f32.mxu0 0.0
    %379 = vmatmul.mubr.f32.gmra.mrb[0].mxu0 %v96
    %v380 = vpop.f32.mrb[0].mxu0
    %v381 = vadd.f32 0.0, %v380
    %v382 = vpop.f32.mrb[0].mxu0
    %383 = vdwg.mxu0
    %v384 = vadd.f32 %v291, %v376
    %v385 = vadd.f32 %v292, %v381
    %386 = vst [vmem:[#allocation4] sm:$0xff] %v384
    %387 = vst [vmem:[#allocation4 + $0x8] sm:$0xff] %v385
    // Predicated region
    $region38: #{tpu_custom_call.1} parent=1 // pred_check
      %p388 = pneg %p85
    $region39: #{tpu_custom_call.1} parent=1 // pred_check_branch
      %390 = sbr.rel (%p388) target = $region41
    $region40: #{tpu_custom_call.1} parent=1 // pred_region
      %v391 = vld [vmem:[#allocation2] sm:$0xff]
      %v392 = vld [vmem:[#allocation2 + $0x8] sm:$0xff]
      %v393 = vmul.f32 %v391, 0.25
      %v394 = vmul.f32 %v392, 0.25
      %395 = vst [vmem:[#allocation13] sm:$0xff] %v393
      %396 = vst [vmem:[#allocation13 + $0x8] sm:$0xff] %v394
      %v397 = vld [vmem:[#allocation3] sm:$0xff]
      %v398 = vld [vmem:[#allocation3 + $0x8] sm:$0xff]
      %399 = vst [vmem:[#allocation14] sm:$0xff] %v397
      %400 = vst [vmem:[#allocation14 + $0x8] sm:$0xff] %v398
      %v401 = vld [vmem:[#allocation4] sm:$0xff]
      %v402 = vld [vmem:[#allocation4 + $0x8] sm:$0xff]
      %403 = vst [vmem:[#allocation16] sm:$0xff] %v401
      %404 = vst [vmem:[#allocation16 + $0x8] sm:$0xff] %v402
    $region41: #{tpu_custom_call.1} parent=1 // pred_fallthru
      _
    // Predicated region
    $region42: #{tpu_custom_call.1} parent=1 // pred_check
      _
    $region43: #{tpu_custom_call.1} parent=1 // pred_check_branch
      %406 = sbr.rel (0) target = $region45
    $region44: #{tpu_custom_call.1} parent=1 // pred_region
      %s408 = ssub.s32 256, 256
      %409 = vsyncadd [#allocation7], %s408
      %s410 = sshll.u32 [#allocation13], 4
      %s411 = int_to_ptr.vmem [resolvable:$true] %s410
      %416 = dma.vmem_to_hbm [thread:$0]  %s411, 256, %s4, [#allocation7], 128, 128, 8
    $region45: #{tpu_custom_call.1} parent=1 // pred_fallthru
      _
    // Predicated region
    $region46: #{tpu_custom_call.1} parent=1 // pred_check
      _
    $region47: #{tpu_custom_call.1} parent=1 // pred_check_branch
      %418 = sbr.rel (0) target = $region49
    $region48: #{tpu_custom_call.1} parent=1 // pred_region
      %s420 = ssub.s32 256, 256
      %421 = vsyncadd [#allocation15], %s420
      %s422 = sshll.u32 [#allocation14], 4
      %s423 = int_to_ptr.vmem [resolvable:$true] %s422
      %428 = dma.vmem_to_hbm [thread:$0]  %s423, 256, %s5, [#allocation15], 128, 128, 8
    $region49: #{tpu_custom_call.1} parent=1 // pred_fallthru
      _
    // Predicated region
    $region50: #{tpu_custom_call.1} parent=1 // pred_check
      _
    $region51: #{tpu_custom_call.1} parent=1 // pred_check_branch
      %430 = sbr.rel (0) target = $region53
    $region52: #{tpu_custom_call.1} parent=1 // pred_region
      %s432 = ssub.s32 256, 256
      %433 = vsyncadd [#allocation15], %s432
      %s434 = sshll.u32 [#allocation16], 4
      %s435 = int_to_ptr.vmem [resolvable:$true] %s434
      %440 = dma.vmem_to_hbm [thread:$0]  %s435, 256, %s6, [#allocation15], 128, 128, 8
    $region53: #{tpu_custom_call.1} parent=1 // pred_fallthru
      _
    // Predicated region
    $region54: #{tpu_custom_call.1} parent=1 // pred_check
      _
    $region55: #{tpu_custom_call.1} parent=1 // pred_check_branch
      %442 = sbr.rel (0) target = $region57
    $region56: #{tpu_custom_call.1} parent=1 // pred_region
      %443 = dma.done [#allocation7], 256
    $region57: #{tpu_custom_call.1} parent=1 // pred_fallthru
      _
    // Predicated region
    $region58: #{tpu_custom_call.1} parent=1 // pred_check
      _
    $region59: #{tpu_custom_call.1} parent=1 // pred_check_branch
      %445 = sbr.rel (0) target = $region61
    $region60: #{tpu_custom_call.1} parent=1 // pred_region
      %446 = dma.done [#allocation15], 256
    $region61: #{tpu_custom_call.1} parent=1 // pred_fallthru
      _
    // Predicated region
    $region62: #{tpu_custom_call.1} parent=1 // pred_check
      _
    $region63: #{tpu_custom_call.1} parent=1 // pred_check_branch
      %448 = sbr.rel (0) target = $region65
    $region64: #{tpu_custom_call.1} parent=1 // pred_region
      %449 = dma.done [#allocation15], 256
    $region65: #{tpu_custom_call.1} parent=1 // pred_fallthru
      _
    %450 = vsyncpa [#allocation6], 1
    %451 = vsyncpa [#allocation9], 1
    %452 = vsyncpa [#allocation12], 1
    %453 = vsyncpa [#allocation7], 1
    %454 = vsyncpa [#allocation15], 1

</llo_original>
